<compile_context>
chip_gen: v6e
topology: v6e:2x2x1
jax: 0.10.0
libtpu: 0.0.40
codegen_flags: <defaults>
</compile_context>

<pallas_src>
import functools

import jax
import jax.numpy as jnp
import numpy as np
from jax.experimental import pallas as pl
from jax.experimental.pallas import tpu as pltpu


def _round_up(x, m):
    return ((x + m - 1) // m) * m


# ---------------------------------------------------------------------------
# Pallas kernels
# ---------------------------------------------------------------------------
def prepare_src_kernel(*refs, has_w):
    """h_src = (X * dsrc) [@ W]  ->  bf16 aggregation operand."""
    if has_w:
        x_ref, dsrc_ref, w_ref, o_ref = refs
    else:
        x_ref, dsrc_ref, o_ref = refs
    h = x_ref[...] * dsrc_ref[...]
    if has_w:
        h = jnp.dot(h, w_ref[...], preferred_element_type=jnp.float32)
    o_ref[...] = h.astype(o_ref.dtype)


def gcn_agg_kernel(*refs, has_w, apply_relu, apply_log_softmax, fout):
    """Block-sparse, K-tiled A @ H accumulation with fused epilogue.

    refs = (ktab_smem, cnt_smem, a_tile(int8), h_tile(bf16), [w], b, ddst,
            out, acc_scratch)
    Grid = (dst_tile i [parallel], compacted-src-tile j [arbitrary]).
    """
    it = iter(refs)
    _ktab_ref = next(it)            # used only by the index_maps
    cnt_ref = next(it)
    a_ref = next(it)
    h_ref = next(it)
    w_ref = next(it) if has_w else None
    b_ref = next(it)
    ddst_ref = next(it)
    o_ref = next(it)
    acc_ref = next(it)

    i = pl.program_id(0)
    j = pl.program_id(1)
    cnt = cnt_ref[i]                # number of non-empty source tiles for dst tile i

    def tile_prod():
        # int8 0/1 adjacency -> bf16 (exact); bf16 x bf16 -> f32 on the MXU.
        a = a_ref[...].astype(jnp.float32).astype(jnp.bfloat16)
        return jnp.dot(a, h_ref[...], preferred_element_type=jnp.float32)

    @pl.when(j == 0)
    def _():
        acc_ref[...] = tile_prod()          # first step writes (no zero+add pass)

    @pl.when(jnp.logical_and(j > 0, j < cnt))
    def _():
        acc_ref[...] += tile_prod()         # steps beyond cnt are skipped (empty tiles)

    @pl.when(j == pl.num_programs(1) - 1)
    def _():
        h = acc_ref[...]
        if has_w:                           # Fin <= Fout: W applied after aggregation
            h = jnp.dot(h, w_ref[...], preferred_element_type=jnp.float32)
        h = h * ddst_ref[...] + b_ref[...]  # BN already folded into W / b on host
        if apply_relu:
            h = jnp.maximum(h, 0.0)
        if apply_log_softmax:
            # Mask lane padding so it does not contribute to the softmax.
            lane = jax.lax.broadcasted_iota(jnp.int32, h.shape, 1)
            h = jnp.where(lane < fout, h, -1e30)
            m = jnp.max(h, axis=-1, keepdims=True)
            s = h - m
            lse = jnp.log(jnp.sum(jnp.exp(s), axis=-1, keepdims=True))
            h = s - lse
        o_ref[...] = h.astype(o_ref.dtype)


# ---------------------------------------------------------------------------
# pallas_call wrappers
# ---------------------------------------------------------------------------
def prepare_src(x, dsrc, w=None, *, tile):
    n_pad, fin_pad = x.shape
    assert n_pad % tile == 0
    has_w = w is not None
    fh = w.shape[1] if has_w else fin_pad

    in_specs = [
        pl.BlockSpec((tile, fin_pad), lambda i: (i, 0)),
        pl.BlockSpec((tile, 1), lambda i: (i, 0)),
    ]
    args = [x, dsrc]
    if has_w:
        in_specs.append(pl.BlockSpec(w.shape, lambda i: (0, 0)))
        args.append(w)

    return pl.pallas_call(
        functools.partial(prepare_src_kernel, has_w=has_w),
        out_shape=jax.ShapeDtypeStruct((n_pad, fh), jnp.bfloat16),
        grid_spec=pltpu.PrefetchScalarGridSpec(
            num_scalar_prefetch=0,
            grid=(n_pad // tile,),
            in_specs=in_specs,
            out_specs=pl.BlockSpec((tile, fh), lambda i: (i, 0)),
        ),
        compiler_params=pltpu.CompilerParams(
            dimension_semantics=("parallel",)),
    )(*args)


def _agg_vmem_limit(tile_n, tile_k, fh, fout_pad, has_w):
    """Scoped-VMEM budget for the aggregation kernel (None -> keep default)."""
    est = (2 * tile_n * tile_k * 1          # A tiles, int8, double buffered
           + 2 * tile_k * fh * 2            # h_src tiles, bf16, double buffered
           + tile_n * fh * 4                # f32 accumulator scratch
           + 2 * tile_n * fout_pad * 4      # f32 resident output block
           + (2 * fh * fout_pad * 4 if has_w else 0)
           + 2 * (tile_n + fout_pad) * 4)   # ddst + bias broadcasts
    limit = int(est * 1.5) + (4 << 20)
    if limit <= (32 << 20):                 # fits the default scoped limit
        return None
    return min(limit, 60 << 20)             # stay under v7x's 64 MiB physical VMEM


def gcn_agg_layer(adj_i8, h_src, w, b, ddst, ktab, cnt, *, has_w, apply_relu,
                  apply_log_softmax, fout, tile_n, tile_k, max_count,
                  vmem_limit_bytes=None):
    n_pad = adj_i8.shape[0]
    fh = h_src.shape[1]
    fout_pad = b.shape[1]
    n_i = n_pad // tile_n
    grid = (n_i, max_count)      # dst tiles (parallel), compacted src tiles (reduction)

    # ktab is flat: ktab[i * max_count + j] = source k-tile index for step j of dst
    # tile i; entries past cnt[i] repeat the last valid index, so the pipeline does
    # not re-DMA anything on skipped steps.
    def a_map(i, j, ktab_ref, cnt_ref):
        return (i, ktab_ref[i * max_count + j])

    def h_map(i, j, ktab_ref, cnt_ref):
        return (ktab_ref[i * max_count + j], 0)

    in_specs = [
        pl.BlockSpec((tile_n, tile_k), a_map),   # A tile (int8 0/1)
        pl.BlockSpec((tile_k, fh), h_map),       # scaled src feats (bf16)
    ]
    args = [adj_i8, h_src]
    if has_w:
        in_specs.append(pl.BlockSpec(w.shape, lambda i, j, kt, ct: (0, 0)))
        args.append(w)
    in_specs += [
        pl.BlockSpec((1, fout_pad), lambda i, j, kt, ct: (0, 0)),   # bias (BN folded)
        pl.BlockSpec((tile_n, 1), lambda i, j, kt, ct: (i, 0)),     # dst norm
    ]
    args += [b, ddst]

    kernel = functools.partial(
        gcn_agg_kernel, has_w=has_w, apply_relu=apply_relu,
        apply_log_softmax=apply_log_softmax, fout=fout)

    cp = dict(dimension_semantics=("parallel", "arbitrary"))
    if vmem_limit_bytes is not None:
        cp["vmem_limit_bytes"] = int(vmem_limit_bytes)

    return pl.pallas_call(
        kernel,
        out_shape=jax.ShapeDtypeStruct((n_pad, fout_pad), jnp.float32),
        grid_spec=pltpu.PrefetchScalarGridSpec(
            num_scalar_prefetch=2,            # ktab, cnt -> SMEM, drive index_maps
            grid=grid,
            in_specs=in_specs,
            out_specs=pl.BlockSpec((tile_n, fout_pad), lambda i, j, kt, ct: (i, 0)),
            scratch_shapes=[pltpu.VMEM((tile_n, fh), jnp.float32)],
        ),
        compiler_params=pltpu.CompilerParams(**cp),
    )(ktab, cnt, *args)


# ---------------------------------------------------------------------------
# Graph preprocessing (once per graph, outside the forward)
# ---------------------------------------------------------------------------
def prepare_graph(adj, *, tile_n=1024, tile_k=2048, node_weight=None):
    n = adj.shape[0]

    # Clamp tiles for small graphs; keep multiples of 128 and tile_k a multiple of
    # tile_n so padding never exceeds one large tile (no lcm blow-up).
    limit = _round_up(n, 128)
    tile_n = max(128, (min(tile_n, limit) // 128) * 128)
    tile_k = max(tile_n, (min(tile_k, limit) // tile_n) * tile_n)
    n_pad = _round_up(n, tile_k)
    pad = n_pad - n

    binary = (adj != 0)
    in_deg = jnp.maximum(binary.sum(axis=1).astype(jnp.float32), 1.0)   # per dst
    out_deg = jnp.maximum(binary.sum(axis=0).astype(jnp.float32), 1.0)  # per src
    dsrc = (out_deg ** -0.5).reshape(-1, 1)
    ddst = (in_deg ** -0.5).reshape(-1, 1)
    if node_weight is not None:
        dsrc = dsrc * node_weight.reshape(-1, 1)

    # 0/1 adjacency stored as int8 in HBM (upcast to bf16 in-kernel).
    adj_p = jnp.pad(binary.astype(jnp.int8), ((0, pad), (0, pad)))
    dsrc_p = jnp.pad(dsrc, ((0, pad), (0, 0)))
    ddst_p = jnp.pad(ddst, ((0, pad), (0, 0)))

    # Per-(dst-tile, src-tile) occupancy -> compacted non-empty k-tile lists.
    n_i, n_k = n_pad // tile_n, n_pad // tile_k
    occ = np.asarray(jnp.any(
        (adj_p != 0).reshape(n_i, tile_n, n_k, tile_k), axis=(1, 3)))
    max_count = max(1, int(occ.sum(axis=1).max()))
    ktab = np.zeros((n_i, max_count), np.int32)
    cnt = np.zeros((n_i,), np.int32)
    for i in range(n_i):
        ks = np.nonzero(occ[i])[0]
        if len(ks) == 0:
            ks = np.array([0], np.int64)       # fully padded dst tile: A block is zero
        cnt[i] = len(ks)
        ktab[i, :len(ks)] = ks
        ktab[i, len(ks):] = ks[-1]             # repeat last index -> no re-DMA on skips

    return dict(adj=adj_p, dsrc=dsrc_p, ddst=ddst_p,
                ktab=jnp.asarray(ktab.reshape(-1)), cnt=jnp.asarray(cnt),
                max_count=max_count, n=n, n_pad=n_pad,
                tile_n=tile_n, tile_k=tile_k)


# ---------------------------------------------------------------------------
# Full forward (inference mode)
# ---------------------------------------------------------------------------
def gcn_arxiv_forward(graph, x, conv_params, bn_params_list, *, eps=1e-5):
    n, n_pad = graph["n"], graph["n_pad"]
    tile_n, tile_k = graph["tile_n"], graph["tile_k"]
    max_count = graph["max_count"]
    adj_p, dsrc_p, ddst_p = graph["adj"], graph["dsrc"], graph["ddst"]
    ktab, cnt = graph["ktab"], graph["cnt"]

    num_layers = len(conv_params)
    fin0 = x.shape[1]
    fin0_pad = _round_up(fin0, 128)
    h = jnp.pad(x.astype(jnp.float32), ((0, n_pad - n), (0, fin0_pad - fin0)))

    for li, (w, b) in enumerate(conv_params):
        fin, fout = w.shape
        is_last = li == num_layers - 1

        # Fold inference-mode BatchNorm into W and b (exact in eval mode):
        #   s = gamma / sqrt(var+eps);  W' = W * s;  b' = b*s + beta - mean*s
        if not is_last:
            gamma, beta, mean, var = bn_params_list[li]
            s = gamma * jax.lax.rsqrt(var + eps)
            w_eff = w * s[None, :]
            b_eff = b * s + (beta - mean * s)
        else:
            w_eff, b_eff = w, jnp.asarray(b)

        fin_pad = _round_up(fin, 128)
        fout_pad = _round_up(fout, 128)
        premultiply = fin > fout                      # DGL MyGCNConv branch
        w_p = jnp.pad(w_eff, ((0, fin_pad - fin), (0, fout_pad - fout)))
        b_p = jnp.pad(b_eff.reshape(1, -1), ((0, 0), (0, fout_pad - fout)))

        # Stage 1: scale by dsrc (and pre-multiply W when Fout < Fin), once.
        h_src = prepare_src(h, dsrc_p, w_p if premultiply else None, tile=tile_k)

        # Stage 2: block-sparse K-tiled aggregation + fused epilogue.
        vmem_limit = _agg_vmem_limit(tile_n, tile_k, h_src.shape[1], fout_pad,
                                     not premultiply)
        h = gcn_agg_layer(adj_p, h_src, None if premultiply else w_p, b_p, ddst_p,
                          ktab, cnt, has_w=not premultiply,
                          apply_relu=not is_last, apply_log_softmax=is_last,
                          fout=fout, tile_n=tile_n, tile_k=tile_k,
                          max_count=max_count, vmem_limit_bytes=vmem_limit)
        # dropout: identity in eval mode

    out_channels = conv_params[-1][0].shape[1]
    return h[:n, :out_channels]


# ---------------------------------------------------------------------------
# Plain-JAX references
# ---------------------------------------------------------------------------
def gcn_arxiv_reference(adj, x, conv_params, bn_params_list, eps=1e-5,
                        match_kernel_rounding=True):
    """match_kernel_rounding=True mirrors the kernel's (mathematically exact)
    BN fold and bf16 rounding of the aggregation operand; False is the plain
    fp32 unfused formulation of the original module."""
    binary = (adj != 0).astype(jnp.float32)
    in_deg = jnp.maximum(binary.sum(axis=1), 1.0)
    out_deg = jnp.maximum(binary.sum(axis=0), 1.0)
    dsrc = (out_deg ** -0.5).reshape(-1, 1)
    ddst = (in_deg ** -0.5).reshape(-1, 1)
    h = x
    num_layers = len(conv_params)
    for i, (w, b) in enumerate(conv_params):
        fin, fout = w.shape
        if match_kernel_rounding and i < num_layers - 1:
            gamma, beta, mean, var = bn_params_list[i]
            s = gamma / jnp.sqrt(var + eps)
            w_eff = w * s[None, :]
            b_eff = b * s + (beta - mean * s)
        else:
            w_eff, b_eff = w, b
        hs = h * dsrc
        if fin > fout:
            hs = hs @ w_eff
        if match_kernel_rounding:
            hs = hs.astype(jnp.bfloat16).astype(jnp.float32)
        agg = binary @ hs
        if fin <= fout:
            agg = agg @ w_eff
        h = agg * ddst + b_eff.reshape(1, -1)
        if i < num_layers - 1:
            if not match_kernel_rounding:
                gamma, beta, mean, var = bn_params_list[i]
                h = (h - mean) / jnp.sqrt(var + eps) * gamma + beta
            h = jnp.maximum(h, 0.0)
    return jax.nn.log_softmax(h, axis=-1)


# ---------------------------------------------------------------------------
# Main
# ---------------------------------------------------------------------------
if __name__ == "__main__":
    key = jax.random.PRNGKey(0)

    # Small but tiling-meaningful sizes (multiple dst tiles, multiple k-tiles,
    # a fully-padded dst tile to exercise the empty-tile skip path).
    N = 768
    in_channels = 64
    hidden_channels = 128
    out_channels = 40        # ogbn-arxiv-like class count
    num_layers = 3
    tile_n = 256             # 4 dst tiles (even -> both v7x TensorCores busy)
    tile_k = 512             # 2 reduction steps exercise the K-tiled accumulator

    # Deterministic random graph: sparse binary adjacency + self-loops.
    key, k_adj, k_x = jax.random.split(key, 3)
    adj = (jax.random.uniform(k_adj, (N, N)) < 0.02).astype(jnp.float32)
    adj = jnp.maximum(adj, jnp.eye(N, dtype=jnp.float32))
    x = jax.random.normal(k_x, (N, in_channels), dtype=jnp.float32)

    # Parameters (xavier-uniform-like weights; non-trivial BN running stats).
    dims = [in_channels] + [hidden_channels] * (num_layers - 1) + [out_channels]
    conv_params = []
    bn_params_list = []
    for li in range(num_layers):
        fin, fout = dims[li], dims[li + 1]
        key, kw = jax.random.split(key)
        bound = (6.0 / (fin + fout)) ** 0.5
        w = jax.random.uniform(kw, (fin, fout), minval=-bound, maxval=bound,
                               dtype=jnp.float32)
        b = jnp.zeros((fout,), jnp.float32)
        conv_params.append((w, b))
        if li < num_layers - 1:
            key, kg, kb, km, kv = jax.random.split(key, 5)
            gamma = 1.0 + 0.1 * jax.random.normal(kg, (fout,), jnp.float32)
            beta = 0.1 * jax.random.normal(kb, (fout,), jnp.float32)
            mean = 0.1 * jax.random.normal(km, (fout,), jnp.float32)
            var = jnp.abs(1.0 + 0.1 * jax.random.normal(kv, (fout,), jnp.float32))
            bn_params_list.append((gamma, beta, mean, var))

    graph = prepare_graph(adj, tile_n=tile_n, tile_k=tile_k)
    out = gcn_arxiv_forward(graph, x, conv_params, bn_params_list)
    out = jax.block_until_ready(out)
    assert out.shape == (N, out_channels), out.shape

    # Strict check against a reference that matches the kernel's (exact) BN fold
    # and bf16 operand rounding; loose check against the plain fp32 module math.
    ref_strict = gcn_arxiv_reference(adj, x, conv_params, bn_params_list,
                                     match_kernel_rounding=True)
    ref_exact = gcn_arxiv_reference(adj, x, conv_params, bn_params_list,
                                    match_kernel_rounding=False)
    err_s = float(jnp.max(jnp.abs(out - ref_strict)))
    err_e = float(jnp.max(jnp.abs(out - ref_exact)))
    assert bool(jnp.all(jnp.isfinite(out)))
    assert jnp.allclose(out, ref_strict, atol=1e-2, rtol=1e-2), \
        f"mismatch vs rounding-matched reference (max abs err = {err_s})"
    assert jnp.allclose(out, ref_exact, atol=1e-1, rtol=1e-1), \
        f"mismatch vs fp32 reference (max abs err = {err_e})"

    # TODO(synk): training-mode dropout / batch-statistic BatchNorm not implemented
    #             (inference-mode forward only; dropout is identity in eval).
    # TODO(synk): edge_weight not supported (binary int8 adjacency assumed).
    # TODO(synk): real ogbn-arxiv at full scale wants a CSR / per-edge formulation;
    #             here sparsity is exploited at A-tile granularity via scalar prefetch.
    print("KERNEL_OK")
</pallas_src>

<mosaic_0001>
module attributes {stable_mosaic.version = 11 : i64} {
  func.func @prepare_src_kernel(%arg0: i32, %arg1: memref<512x128xf32, #tpu.memory_space<vmem>>, %arg2: memref<512x1xf32, #tpu.memory_space<vmem>>, %arg3: memref<512x128xbf16, #tpu.memory_space<vmem>>) attributes {dimension_semantics = [#tpu.dimension_semantics<parallel>], iteration_bounds = array<i64: 2>, scalar_prefetch = 0 : i64, scratch_operands = 0 : i64, tpu.core_type = #tpu.core_type<tc>, window_params = [{transform_indices = @transform_0, window_bounds = array<i64: 512, 128>}, {transform_indices = @transform_1, window_bounds = array<i64: 512, 1>}, {transform_indices = @transform_2, window_bounds = array<i64: 512, 128>}]} {
    %c0 = arith.constant 0 : index
    %c0_0 = arith.constant 0 : index
    %0 = vector.load %arg1[%c0, %c0_0] : memref<512x128xf32, #tpu.memory_space<vmem>>, vector<512x128xf32>
    %c0_1 = arith.constant 0 : index
    %c0_2 = arith.constant 0 : index
    %1 = vector.load %arg2[%c0_1, %c0_2] : memref<512x1xf32, #tpu.memory_space<vmem>>, vector<512x1xf32>
    %2 = vector.broadcast %1 : vector<512x1xf32> to vector<512x128xf32>
    %3 = arith.mulf %0, %2 : vector<512x128xf32>
    %4 = arith.truncf %3 : vector<512x128xf32> to vector<512x128xbf16>
    %c0_3 = arith.constant 0 : index
    %c0_4 = arith.constant 0 : index
    %5 = vector.load %arg3[%c0_3, %c0_4] : memref<512x128xbf16, #tpu.memory_space<vmem>>, vector<512x128xbf16>
    tpu.vector_store %arg3[%c0_3, %c0_4], %4 {strides = array<i32>} : memref<512x128xbf16, #tpu.memory_space<vmem>>, vector<512x128xbf16>,
    return
  }
  func.func @transform_0(%arg0: i32) -> (i32, i32) {
    %c0_i32 = arith.constant 0 : i32
    %c0_i32_0 = arith.constant 0 : i32
    return %arg0, %c0_i32 : i32, i32
  }
  func.func @transform_1(%arg0: i32) -> (i32, i32) {
    %c0_i32 = arith.constant 0 : i32
    %c0_i32_0 = arith.constant 0 : i32
    return %arg0, %c0_i32 : i32, i32
  }
  func.func @transform_2(%arg0: i32) -> (i32, i32) {
    %c0_i32 = arith.constant 0 : i32
    %c0_i32_0 = arith.constant 0 : i32
    return %arg0, %c0_i32 : i32, i32
  }
}

</mosaic_0001>

<llo_original>
// kernel: tpu_custom_call.1
$region0: #{tpu_custom_call.1}
  #allocation0 [shape = 'u32[]', space=smem, size = 0x4, offset = 0x4, fixed_abs, tag = 'smem constant byte address 0x4 - core index']
  #allocation1 [shape = 'u32[144,128]{1,0:T(1,128)}', space=vmem, size = 0x12000, scoped, tag = 'internal scratch']
  %s0 = inlined_call_operand.vmem [shape: f32[1024,128], index: 0, kind: input, shape index: {}]
  %s1 = inlined_call_operand.vmem [shape: f32[1024,1], index: 1, kind: input, shape index: {}]
  %s2 = inlined_call_operand.hbm [shape: bf16[1024,128], index: 2, kind: output, shape index: {}]
  %s3 = sld [smem:[#allocation0]]
  $region41: #{tpu_custom_call.1} parent=0
    _
  %s5 = ssub.s32 1, %s3
  %s6 = scalar_select 0, %s5, %s3
  $region1: #{tpu_custom_call.1} parent=0
    #allocation2 [shape = 'u8[262144]{0}', space=vmem, size = 0x40000, scoped, tag = 'output window, operand 0']
    #allocation3 [shape = 's32[2]{0}', space=sflag, size = 0x8, scoped, tag = 'scoped memory for tpu_custom_call.1']
    %7 = vsyncpa [#allocation3], 0
    %s8 = scalar_lea.sflag [#allocation3], 1
    %9 = vsyncpa %s8, 0
    loop: start=0, step=1, limit=4
    $region2: #{tpu_custom_call.1} parent=1 // loop_pre_header
      _
    $region3: #{tpu_custom_call.1} parent=1 // loop_header
      %s11 = sphi 0, %s15
      %p12 = scmp.ge.s32.totalorder %s11, 4
      %s21 = sphi 0, %s23
      %s24 = sphi 0, %s21
      %s25 = sphi 0, %s24
      %s41 = sphi 0, %s25
      %s47 = sphi 0, %s49
      %s50 = sphi 0, %s47
      %s51 = sphi 0, %s50
      %s67 = sphi 0, %s51
      %s73 = sphi 0, %s75
      %s76 = sphi 0, %s73
      %s77 = sphi 0, %s76
      %s93 = sphi 0, %s77
    $region4: #{tpu_custom_call.1} parent=1 // loop_header_branch
      %14 = sbr.rel (%p12) target = $region8
    $region5: #{tpu_custom_call.1} parent=1 // loop_body
      %s16 = ssub.s32 %s11, 1
      %s17 = ssub.s32 %s11, 2
      %s18 = sadd.s32 %s11, 1
      %s19 = ssub.s32 %s11, %s18
      %p20 = scmp.eq.s32.totalorder %s19, 0
      %s22 = sadd.s32 %s21, 1
      %s23 = scalar_select %p20, %s21, %s22
      %p26 = pneg %p20
      %p27 = scmp.eq.s32.totalorder %s11, 1
      %p28 = por %p26, %p27
      %p29 = scmp.ne.s32.totalorder %s21, %s24
      %p30 = scmp.eq.s32.totalorder %s11, 0
      %p31 = por %p29, %p30
      %p32 = scmp.ne.s32.totalorder %s21, %s24
      %p33 = scmp.eq.s32.totalorder %s16, 1
      %p34 = por %p32, %p33
      %p35 = scmp.ne.s32.totalorder %s24, %s25
      %p36 = scmp.eq.s32.totalorder %s16, 0
      %p37 = por %p35, %p36
      %p38 = scmp.ne.s32.totalorder %s24, %s25
      %p39 = scmp.eq.s32.totalorder %s17, 1
      %p40 = por %p38, %p39
      %p42 = scmp.ne.s32.totalorder %s25, %s41
      %p43 = scmp.eq.s32.totalorder %s17, 0
      %p44 = por %p42, %p43
      %s45 = ssub.s32 %s11, %s18
      %p46 = scmp.eq.s32.totalorder %s45, 0
      %s48 = sadd.s32 %s47, 1
      %s49 = scalar_select %p46, %s47, %s48
      %p52 = pneg %p46
      %p53 = scmp.eq.s32.totalorder %s11, 1
      %p54 = por %p52, %p53
      %p55 = scmp.ne.s32.totalorder %s47, %s50
      %p56 = scmp.eq.s32.totalorder %s11, 0
      %p57 = por %p55, %p56
      %p58 = scmp.ne.s32.totalorder %s47, %s50
      %p59 = scmp.eq.s32.totalorder %s16, 1
      %p60 = por %p58, %p59
      %p61 = scmp.ne.s32.totalorder %s50, %s51
      %p62 = scmp.eq.s32.totalorder %s16, 0
      %p63 = por %p61, %p62
      %p64 = scmp.ne.s32.totalorder %s50, %s51
      %p65 = scmp.eq.s32.totalorder %s17, 1
      %p66 = por %p64, %p65
      %p68 = scmp.ne.s32.totalorder %s51, %s67
      %p69 = scmp.eq.s32.totalorder %s17, 0
      %p70 = por %p68, %p69
      %s71 = ssub.s32 %s11, %s18
      %p72 = scmp.eq.s32.totalorder %s71, 0
      %s74 = sadd.s32 %s73, 1
      %s75 = scalar_select %p72, %s73, %s74
      %p78 = pneg %p72
      %p79 = scmp.eq.s32.totalorder %s11, 1
      %p80 = por %p78, %p79
      %p81 = scmp.ne.s32.totalorder %s73, %s76
      %p82 = scmp.eq.s32.totalorder %s11, 0
      %p83 = por %p81, %p82
      %p84 = scmp.ne.s32.totalorder %s73, %s76
      %p85 = scmp.eq.s32.totalorder %s16, 1
      %p86 = por %p84, %p85
      %p87 = scmp.ne.s32.totalorder %s76, %s77
      %p88 = scmp.eq.s32.totalorder %s16, 0
      %p89 = por %p87, %p88
      %p90 = scmp.ne.s32.totalorder %s76, %s77
      %p91 = scmp.eq.s32.totalorder %s17, 1
      %p92 = por %p90, %p91
      %p94 = scmp.ne.s32.totalorder %s77, %s93
      %p95 = scmp.eq.s32.totalorder %s17, 0
      %p96 = por %p94, %p95
      %p97 = scmp.le.s32.totalorder 1, %s11
      %p98 = scmp.lt.s32.totalorder %s11, 3
      %p99 = pnand %p97, %p98
      %p100 = pneg %p99
      // Predicated region
      $region9: #{tpu_custom_call.1} parent=5 // pred_check
        _
      $region10: #{tpu_custom_call.1} parent=5 // pred_check_branch
        %102 = sbr.rel (%p99) target = $region12
      $region11: #{tpu_custom_call.1} parent=5 // pred_region
        %s103 = ssub.s32 %s11, 1
      $region12: #{tpu_custom_call.1} parent=5 // pred_fallthru
        _
      %p104 = scmp.lt.s32.totalorder %s11, 2
      // Predicated region
      $region13: #{tpu_custom_call.1} parent=5 // pred_check
        %p105 = pneg %p104
      $region14: #{tpu_custom_call.1} parent=5 // pred_check_branch
        %107 = sbr.rel (%p105) target = $region16
      $region15: #{tpu_custom_call.1} parent=5 // pred_region
        // Predicated region
        $region17: #{tpu_custom_call.1} parent=15 // pred_check
          %p108 = pneg %p31
        $region18: #{tpu_custom_call.1} parent=15 // pred_check_branch
          %110 = sbr.rel (%p108) target = $region20
        $region19: #{tpu_custom_call.1} parent=15 // pred_region
          %s111 = smul.u32 64, %s11
          %p112 = scmp.lt.s32.totalorder %s111, 127
          %s113 = scalar_select %p112, %s111, 127
          %s114 = smul.addr %s113, 8
          %s115 = scalar_lea.vmem %s0, %s114
          %s116 = smul.u32 64, %s11
        $region20: #{tpu_custom_call.1} parent=15 // pred_fallthru
          _
        // Predicated region
        $region21: #{tpu_custom_call.1} parent=15 // pred_check
          %p117 = pneg %p57
        $region22: #{tpu_custom_call.1} parent=15 // pred_check_branch
          %119 = sbr.rel (%p117) target = $region24
        $region23: #{tpu_custom_call.1} parent=15 // pred_region
          %s120 = smul.u32 64, %s11
          %p121 = scmp.lt.s32.totalorder %s120, 127
          %s122 = scalar_select %p121, %s120, 127
          %s123 = smul.addr %s122, 8
          %s124 = scalar_lea.vmem %s1, %s123
          %s125 = smul.u32 64, %s11
        $region24: #{tpu_custom_call.1} parent=15 // pred_fallthru
          _
      $region16: #{tpu_custom_call.1} parent=5 // pred_fallthru
        _
      %p126 = scmp.le.s32.totalorder 1, %s11
      %p127 = scmp.lt.s32.totalorder %s11, 3
      %p128 = pnand %p126, %p127
      %p129 = pneg %p128
      // Predicated region
      $region25: #{tpu_custom_call.1} parent=5 // pred_check
        _
      $region26: #{tpu_custom_call.1} parent=5 // pred_check_branch
        %131 = sbr.rel (%p128) target = $region28
      $region27: #{tpu_custom_call.1} parent=5 // pred_region
        %s132 = ssub.s32 %s11, 1
        %s133 = smul.u32 64, %s16
        %p134 = scmp.lt.s32.totalorder %s133, 127
        %s135 = scalar_select %p134, %s133, 127
        %s136 = smul.addr %s135, 8
        %s137 = scalar_lea.vmem %s0, %s136
        %p138 = pneg %p37
        %p139 = pneg %p34
        %s140 = smul.u32 64, %s16
        %p141 = scmp.lt.s32.totalorder %s140, 127
        %s142 = scalar_select %p141, %s140, 127
        %s143 = smul.addr %s142, 8
        %s144 = scalar_lea.vmem %s1, %s143
        %p145 = pneg %p63
        %p146 = pneg %p60
        %p147 = pneg %p89
        %p148 = pneg %p86
        %s149 = sand.u32 %s76, 1
        %s150 = scalar_lea.sflag [#allocation3], %s149
        %s151 = sand.u32 %s76, 1
        %s152 = smul.addr %s151, 256
        %s153 = scalar_lea.vmem [#allocation2], %s152
        %s154 = smul.u32 64, %s16
        %p155 = scmp.lt.s32.totalorder %s154, 127
        %s156 = scalar_select %p155, %s154, 127
        %s157 = smul.addr %s156, 8
        %s158 = scalar_lea.vmem %s0, %s157
        %s159 = smul.u32 64, %s16
        %s160 = smul.u32 64, %s16
        %p161 = scmp.lt.s32.totalorder %s160, 127
        %s162 = scalar_select %p161, %s160, 127
        %s163 = smul.addr %s162, 8
        %s164 = scalar_lea.vmem %s1, %s163
        %s165 = smul.u32 64, %s16
        %s166 = smul.u32 64, %s16
        %v167 = vld [vmem:[%s158] sm:$0xff]
        %v168 = vld [vmem:[%s158 + $0x8] sm:$0xff]
        %v169 = vld [vmem:[%s158 + $0x10] sm:$0xff]
        %v170 = vld [vmem:[%s158 + $0x18] sm:$0xff]
        %v171 = vld [vmem:[%s158 + $0x20] sm:$0xff]
        %v172 = vld [vmem:[%s158 + $0x28] sm:$0xff]
        %v173 = vld [vmem:[%s158 + $0x30] sm:$0xff]
        %v174 = vld [vmem:[%s158 + $0x38] sm:$0xff]
        %v175 = vld [vmem:[%s158 + $0x40] sm:$0xff]
        %v176 = vld [vmem:[%s158 + $0x48] sm:$0xff]
        %v177 = vld [vmem:[%s158 + $0x50] sm:$0xff]
        %v178 = vld [vmem:[%s158 + $0x58] sm:$0xff]
        %v179 = vld [vmem:[%s158 + $0x60] sm:$0xff]
        %v180 = vld [vmem:[%s158 + $0x68] sm:$0xff]
        %v181 = vld [vmem:[%s158 + $0x70] sm:$0xff]
        %v182 = vld [vmem:[%s158 + $0x78] sm:$0xff]
        %v183 = vld [vmem:[%s158 + $0x80] sm:$0xff]
        %v184 = vld [vmem:[%s158 + $0x88] sm:$0xff]
        %v185 = vld [vmem:[%s158 + $0x90] sm:$0xff]
        %v186 = vld [vmem:[%s158 + $0x98] sm:$0xff]
        %v187 = vld [vmem:[%s158 + $0xa0] sm:$0xff]
        %v188 = vld [vmem:[%s158 + $0xa8] sm:$0xff]
        %v189 = vld [vmem:[%s158 + $0xb0] sm:$0xff]
        %v190 = vld [vmem:[%s158 + $0xb8] sm:$0xff]
        %v191 = vld [vmem:[%s158 + $0xc0] sm:$0xff]
        %v192 = vld [vmem:[%s158 + $0xc8] sm:$0xff]
        %v193 = vld [vmem:[%s158 + $0xd0] sm:$0xff]
        %v194 = vld [vmem:[%s158 + $0xd8] sm:$0xff]
        %v195 = vld [vmem:[%s158 + $0xe0] sm:$0xff]
        %v196 = vld [vmem:[%s158 + $0xe8] sm:$0xff]
        %v197 = vld [vmem:[%s158 + $0xf0] sm:$0xff]
        %v198 = vld [vmem:[%s158 + $0xf8] sm:$0xff]
        %v199 = vld [vmem:[%s158 + $0x100] sm:$0xff]
        %v200 = vld [vmem:[%s158 + $0x108] sm:$0xff]
        %v201 = vld [vmem:[%s158 + $0x110] sm:$0xff]
        %v202 = vld [vmem:[%s158 + $0x118] sm:$0xff]
        %v203 = vld [vmem:[%s158 + $0x120] sm:$0xff]
        %v204 = vld [vmem:[%s158 + $0x128] sm:$0xff]
        %v205 = vld [vmem:[%s158 + $0x130] sm:$0xff]
        %v206 = vld [vmem:[%s158 + $0x138] sm:$0xff]
        %v207 = vld [vmem:[%s158 + $0x140] sm:$0xff]
        %v208 = vld [vmem:[%s158 + $0x148] sm:$0xff]
        %v209 = vld [vmem:[%s158 + $0x150] sm:$0xff]
        %v210 = vld [vmem:[%s158 + $0x158] sm:$0xff]
        %v211 = vld [vmem:[%s158 + $0x160] sm:$0xff]
        %v212 = vld [vmem:[%s158 + $0x168] sm:$0xff]
        %v213 = vld [vmem:[%s158 + $0x170] sm:$0xff]
        %v214 = vld [vmem:[%s158 + $0x178] sm:$0xff]
        %v215 = vld [vmem:[%s158 + $0x180] sm:$0xff]
        %v216 = vld [vmem:[%s158 + $0x188] sm:$0xff]
        %v217 = vld [vmem:[%s158 + $0x190] sm:$0xff]
        %v218 = vld [vmem:[%s158 + $0x198] sm:$0xff]
        %v219 = vld [vmem:[%s158 + $0x1a0] sm:$0xff]
        %v220 = vld [vmem:[%s158 + $0x1a8] sm:$0xff]
        %v221 = vld [vmem:[%s158 + $0x1b0] sm:$0xff]
        %v222 = vld [vmem:[%s158 + $0x1b8] sm:$0xff]
        %v223 = vld [vmem:[%s158 + $0x1c0] sm:$0xff]
        %v224 = vld [vmem:[%s158 + $0x1c8] sm:$0xff]
        %v225 = vld [vmem:[%s158 + $0x1d0] sm:$0xff]
        %v226 = vld [vmem:[%s158 + $0x1d8] sm:$0xff]
        %v227 = vld [vmem:[%s158 + $0x1e0] sm:$0xff]
        %v228 = vld [vmem:[%s158 + $0x1e8] sm:$0xff]
        %v229 = vld [vmem:[%s158 + $0x1f0] sm:$0xff]
        %v230 = vld [vmem:[%s158 + $0x1f8] sm:$0xff]
        %v231 = vld [vmem:[%s164] sm:$0xff]
        %v232 = vld [vmem:[%s164 + $0x8] sm:$0xff]
        %v233 = vld [vmem:[%s164 + $0x10] sm:$0xff]
        %v234 = vld [vmem:[%s164 + $0x18] sm:$0xff]
        %v235 = vld [vmem:[%s164 + $0x20] sm:$0xff]
        %v236 = vld [vmem:[%s164 + $0x28] sm:$0xff]
        %v237 = vld [vmem:[%s164 + $0x30] sm:$0xff]
        %v238 = vld [vmem:[%s164 + $0x38] sm:$0xff]
        %v239 = vld [vmem:[%s164 + $0x40] sm:$0xff]
        %v240 = vld [vmem:[%s164 + $0x48] sm:$0xff]
        %v241 = vld [vmem:[%s164 + $0x50] sm:$0xff]
        %v242 = vld [vmem:[%s164 + $0x58] sm:$0xff]
        %v243 = vld [vmem:[%s164 + $0x60] sm:$0xff]
        %v244 = vld [vmem:[%s164 + $0x68] sm:$0xff]
        %v245 = vld [vmem:[%s164 + $0x70] sm:$0xff]
        %v246 = vld [vmem:[%s164 + $0x78] sm:$0xff]
        %v247 = vld [vmem:[%s164 + $0x80] sm:$0xff]
        %v248 = vld [vmem:[%s164 + $0x88] sm:$0xff]
        %v249 = vld [vmem:[%s164 + $0x90] sm:$0xff]
        %v250 = vld [vmem:[%s164 + $0x98] sm:$0xff]
        %v251 = vld [vmem:[%s164 + $0xa0] sm:$0xff]
        %v252 = vld [vmem:[%s164 + $0xa8] sm:$0xff]
        %v253 = vld [vmem:[%s164 + $0xb0] sm:$0xff]
        %v254 = vld [vmem:[%s164 + $0xb8] sm:$0xff]
        %v255 = vld [vmem:[%s164 + $0xc0] sm:$0xff]
        %v256 = vld [vmem:[%s164 + $0xc8] sm:$0xff]
        %v257 = vld [vmem:[%s164 + $0xd0] sm:$0xff]
        %v258 = vld [vmem:[%s164 + $0xd8] sm:$0xff]
        %v259 = vld [vmem:[%s164 + $0xe0] sm:$0xff]
        %v260 = vld [vmem:[%s164 + $0xe8] sm:$0xff]
        %v261 = vld [vmem:[%s164 + $0xf0] sm:$0xff]
        %v262 = vld [vmem:[%s164 + $0xf8] sm:$0xff]
        %v263 = vld [vmem:[%s164 + $0x100] sm:$0xff]
        %v264 = vld [vmem:[%s164 + $0x108] sm:$0xff]
        %v265 = vld [vmem:[%s164 + $0x110] sm:$0xff]
        %v266 = vld [vmem:[%s164 + $0x118] sm:$0xff]
        %v267 = vld [vmem:[%s164 + $0x120] sm:$0xff]
        %v268 = vld [vmem:[%s164 + $0x128] sm:$0xff]
        %v269 = vld [vmem:[%s164 + $0x130] sm:$0xff]
        %v270 = vld [vmem:[%s164 + $0x138] sm:$0xff]
        %v271 = vld [vmem:[%s164 + $0x140] sm:$0xff]
        %v272 = vld [vmem:[%s164 + $0x148] sm:$0xff]
        %v273 = vld [vmem:[%s164 + $0x150] sm:$0xff]
        %v274 = vld [vmem:[%s164 + $0x158] sm:$0xff]
        %v275 = vld [vmem:[%s164 + $0x160] sm:$0xff]
        %v276 = vld [vmem:[%s164 + $0x168] sm:$0xff]
        %v277 = vld [vmem:[%s164 + $0x170] sm:$0xff]
        %v278 = vld [vmem:[%s164 + $0x178] sm:$0xff]
        %v279 = vld [vmem:[%s164 + $0x180] sm:$0xff]
        %v280 = vld [vmem:[%s164 + $0x188] sm:$0xff]
        %v281 = vld [vmem:[%s164 + $0x190] sm:$0xff]
        %v282 = vld [vmem:[%s164 + $0x198] sm:$0xff]
        %v283 = vld [vmem:[%s164 + $0x1a0] sm:$0xff]
        %v284 = vld [vmem:[%s164 + $0x1a8] sm:$0xff]
        %v285 = vld [vmem:[%s164 + $0x1b0] sm:$0xff]
        %v286 = vld [vmem:[%s164 + $0x1b8] sm:$0xff]
        %v287 = vld [vmem:[%s164 + $0x1c0] sm:$0xff]
        %v288 = vld [vmem:[%s164 + $0x1c8] sm:$0xff]
        %v289 = vld [vmem:[%s164 + $0x1d0] sm:$0xff]
        %v290 = vld [vmem:[%s164 + $0x1d8] sm:$0xff]
        %v291 = vld [vmem:[%s164 + $0x1e0] sm:$0xff]
        %v292 = vld [vmem:[%s164 + $0x1e8] sm:$0xff]
        %v293 = vld [vmem:[%s164 + $0x1f0] sm:$0xff]
        %v294 = vld [vmem:[%s164 + $0x1f8] sm:$0xff]
        %296 = vset.pattern.permute.xlu0 0
        %297 = vperm.xlu0 %296, %v231
        %v298 = vpop.permute.xlu0 %297
        %301 = vset.pattern.permute.xlu0 0
        %302 = vperm.xlu0 %301, %v232
        %v303 = vpop.permute.xlu0 %302
        %306 = vset.pattern.permute.xlu0 0
        %307 = vperm.xlu0 %306, %v233
        %v308 = vpop.permute.xlu0 %307
        %311 = vset.pattern.permute.xlu0 0
        %312 = vperm.xlu0 %311, %v234
        %v313 = vpop.permute.xlu0 %312
        %316 = vset.pattern.permute.xlu0 0
        %317 = vperm.xlu0 %316, %v235
        %v318 = vpop.permute.xlu0 %317
        %321 = vset.pattern.permute.xlu0 0
        %322 = vperm.xlu0 %321, %v236
        %v323 = vpop.permute.xlu0 %322
        %326 = vset.pattern.permute.xlu0 0
        %327 = vperm.xlu0 %326, %v237
        %v328 = vpop.permute.xlu0 %327
        %331 = vset.pattern.permute.xlu0 0
        %332 = vperm.xlu0 %331, %v238
        %v333 = vpop.permute.xlu0 %332
        %336 = vset.pattern.permute.xlu0 0
        %337 = vperm.xlu0 %336, %v239
        %v338 = vpop.permute.xlu0 %337
        %341 = vset.pattern.permute.xlu0 0
        %342 = vperm.xlu0 %341, %v240
        %v343 = vpop.permute.xlu0 %342
        %346 = vset.pattern.permute.xlu0 0
        %347 = vperm.xlu0 %346, %v241
        %v348 = vpop.permute.xlu0 %347
        %351 = vset.pattern.permute.xlu0 0
        %352 = vperm.xlu0 %351, %v242
        %v353 = vpop.permute.xlu0 %352
        %356 = vset.pattern.permute.xlu0 0
        %357 = vperm.xlu0 %356, %v243
        %v358 = vpop.permute.xlu0 %357
        %361 = vset.pattern.permute.xlu0 0
        %362 = vperm.xlu0 %361, %v244
        %v363 = vpop.permute.xlu0 %362
        %366 = vset.pattern.permute.xlu0 0
        %367 = vperm.xlu0 %366, %v245
        %v368 = vpop.permute.xlu0 %367
        %371 = vset.pattern.permute.xlu0 0
        %372 = vperm.xlu0 %371, %v246
        %v373 = vpop.permute.xlu0 %372
        %376 = vset.pattern.permute.xlu0 0
        %377 = vperm.xlu0 %376, %v247
        %v378 = vpop.permute.xlu0 %377
        %381 = vset.pattern.permute.xlu0 0
        %382 = vperm.xlu0 %381, %v248
        %v383 = vpop.permute.xlu0 %382
        %386 = vset.pattern.permute.xlu0 0
        %387 = vperm.xlu0 %386, %v249
        %v388 = vpop.permute.xlu0 %387
        %391 = vset.pattern.permute.xlu0 0
        %392 = vperm.xlu0 %391, %v250
        %v393 = vpop.permute.xlu0 %392
        %396 = vset.pattern.permute.xlu0 0
        %397 = vperm.xlu0 %396, %v251
        %v398 = vpop.permute.xlu0 %397
        %401 = vset.pattern.permute.xlu0 0
        %402 = vperm.xlu0 %401, %v252
        %v403 = vpop.permute.xlu0 %402
        %406 = vset.pattern.permute.xlu0 0
        %407 = vperm.xlu0 %406, %v253
        %v408 = vpop.permute.xlu0 %407
        %411 = vset.pattern.permute.xlu0 0
        %412 = vperm.xlu0 %411, %v254
        %v413 = vpop.permute.xlu0 %412
        %416 = vset.pattern.permute.xlu0 0
        %417 = vperm.xlu0 %416, %v255
        %v418 = vpop.permute.xlu0 %417
        %421 = vset.pattern.permute.xlu0 0
        %422 = vperm.xlu0 %421, %v256
        %v423 = vpop.permute.xlu0 %422
        %426 = vset.pattern.permute.xlu0 0
        %427 = vperm.xlu0 %426, %v257
        %v428 = vpop.permute.xlu0 %427
        %431 = vset.pattern.permute.xlu0 0
        %432 = vperm.xlu0 %431, %v258
        %v433 = vpop.permute.xlu0 %432
        %436 = vset.pattern.permute.xlu0 0
        %437 = vperm.xlu0 %436, %v259
        %v438 = vpop.permute.xlu0 %437
        %441 = vset.pattern.permute.xlu0 0
        %442 = vperm.xlu0 %441, %v260
        %v443 = vpop.permute.xlu0 %442
        %446 = vset.pattern.permute.xlu0 0
        %447 = vperm.xlu0 %446, %v261
        %v448 = vpop.permute.xlu0 %447
        %451 = vset.pattern.permute.xlu0 0
        %452 = vperm.xlu0 %451, %v262
        %v453 = vpop.permute.xlu0 %452
        %456 = vset.pattern.permute.xlu0 0
        %457 = vperm.xlu0 %456, %v263
        %v458 = vpop.permute.xlu0 %457
        %461 = vset.pattern.permute.xlu0 0
        %462 = vperm.xlu0 %461, %v264
        %v463 = vpop.permute.xlu0 %462
        %466 = vset.pattern.permute.xlu0 0
        %467 = vperm.xlu0 %466, %v265
        %v468 = vpop.permute.xlu0 %467
        %471 = vset.pattern.permute.xlu0 0
        %472 = vperm.xlu0 %471, %v266
        %v473 = vpop.permute.xlu0 %472
        %476 = vset.pattern.permute.xlu0 0
        %477 = vperm.xlu0 %476, %v267
        %v478 = vpop.permute.xlu0 %477
        %481 = vset.pattern.permute.xlu0 0
        %482 = vperm.xlu0 %481, %v268
        %v483 = vpop.permute.xlu0 %482
        %486 = vset.pattern.permute.xlu0 0
        %487 = vperm.xlu0 %486, %v269
        %v488 = vpop.permute.xlu0 %487
        %491 = vset.pattern.permute.xlu0 0
        %492 = vperm.xlu0 %491, %v270
        %v493 = vpop.permute.xlu0 %492
        %496 = vset.pattern.permute.xlu0 0
        %497 = vperm.xlu0 %496, %v271
        %v498 = vpop.permute.xlu0 %497
        %501 = vset.pattern.permute.xlu0 0
        %502 = vperm.xlu0 %501, %v272
        %v503 = vpop.permute.xlu0 %502
        %506 = vset.pattern.permute.xlu0 0
        %507 = vperm.xlu0 %506, %v273
        %v508 = vpop.permute.xlu0 %507
        %511 = vset.pattern.permute.xlu0 0
        %512 = vperm.xlu0 %511, %v274
        %v513 = vpop.permute.xlu0 %512
        %516 = vset.pattern.permute.xlu0 0
        %517 = vperm.xlu0 %516, %v275
        %v518 = vpop.permute.xlu0 %517
        %521 = vset.pattern.permute.xlu0 0
        %522 = vperm.xlu0 %521, %v276
        %v523 = vpop.permute.xlu0 %522
        %526 = vset.pattern.permute.xlu0 0
        %527 = vperm.xlu0 %526, %v277
        %v528 = vpop.permute.xlu0 %527
        %531 = vset.pattern.permute.xlu0 0
        %532 = vperm.xlu0 %531, %v278
        %v533 = vpop.permute.xlu0 %532
        %536 = vset.pattern.permute.xlu0 0
        %537 = vperm.xlu0 %536, %v279
        %v538 = vpop.permute.xlu0 %537
        %541 = vset.pattern.permute.xlu0 0
        %542 = vperm.xlu0 %541, %v280
        %v543 = vpop.permute.xlu0 %542
        %546 = vset.pattern.permute.xlu0 0
        %547 = vperm.xlu0 %546, %v281
        %v548 = vpop.permute.xlu0 %547
        %551 = vset.pattern.permute.xlu0 0
        %552 = vperm.xlu0 %551, %v282
        %v553 = vpop.permute.xlu0 %552
        %556 = vset.pattern.permute.xlu0 0
        %557 = vperm.xlu0 %556, %v283
        %v558 = vpop.permute.xlu0 %557
        %561 = vset.pattern.permute.xlu0 0
        %562 = vperm.xlu0 %561, %v284
        %v563 = vpop.permute.xlu0 %562
        %566 = vset.pattern.permute.xlu0 0
        %567 = vperm.xlu0 %566, %v285
        %v568 = vpop.permute.xlu0 %567
        %571 = vset.pattern.permute.xlu0 0
        %572 = vperm.xlu0 %571, %v286
        %v573 = vpop.permute.xlu0 %572
        %576 = vset.pattern.permute.xlu0 0
        %577 = vperm.xlu0 %576, %v287
        %v578 = vpop.permute.xlu0 %577
        %581 = vset.pattern.permute.xlu0 0
        %582 = vperm.xlu0 %581, %v288
        %v583 = vpop.permute.xlu0 %582
        %586 = vset.pattern.permute.xlu0 0
        %587 = vperm.xlu0 %586, %v289
        %v588 = vpop.permute.xlu0 %587
        %591 = vset.pattern.permute.xlu0 0
        %592 = vperm.xlu0 %591, %v290
        %v593 = vpop.permute.xlu0 %592
        %596 = vset.pattern.permute.xlu0 0
        %597 = vperm.xlu0 %596, %v291
        %v598 = vpop.permute.xlu0 %597
        %601 = vset.pattern.permute.xlu0 0
        %602 = vperm.xlu0 %601, %v292
        %v603 = vpop.permute.xlu0 %602
        %606 = vset.pattern.permute.xlu0 0
        %607 = vperm.xlu0 %606, %v293
        %v608 = vpop.permute.xlu0 %607
        %611 = vset.pattern.permute.xlu0 0
        %612 = vperm.xlu0 %611, %v294
        %v613 = vpop.permute.xlu0 %612
        %v615 = vmul.f32 %v167, %v298
        %v616 = vmul.f32 %v168, %v303
        %v617 = vmul.f32 %v169, %v308
        %v618 = vmul.f32 %v170, %v313
        %v619 = vmul.f32 %v171, %v318
        %v620 = vmul.f32 %v172, %v323
        %v621 = vmul.f32 %v173, %v328
        %v622 = vmul.f32 %v174, %v333
        %v623 = vmul.f32 %v175, %v338
        %v624 = vmul.f32 %v176, %v343
        %v625 = vmul.f32 %v177, %v348
        %v626 = vmul.f32 %v178, %v353
        %v627 = vmul.f32 %v179, %v358
        %v628 = vmul.f32 %v180, %v363
        %v629 = vmul.f32 %v181, %v368
        %v630 = vmul.f32 %v182, %v373
        %v631 = vmul.f32 %v183, %v378
        %v632 = vmul.f32 %v184, %v383
        %v633 = vmul.f32 %v185, %v388
        %v634 = vmul.f32 %v186, %v393
        %v635 = vmul.f32 %v187, %v398
        %v636 = vmul.f32 %v188, %v403
        %v637 = vmul.f32 %v189, %v408
        %v638 = vmul.f32 %v190, %v413
        %v639 = vmul.f32 %v191, %v418
        %v640 = vmul.f32 %v192, %v423
        %v641 = vmul.f32 %v193, %v428
        %v642 = vmul.f32 %v194, %v433
        %v643 = vmul.f32 %v195, %v438
        %v644 = vmul.f32 %v196, %v443
        %v645 = vmul.f32 %v197, %v448
        %v646 = vmul.f32 %v198, %v453
        %v647 = vmul.f32 %v199, %v458
        %v648 = vmul.f32 %v200, %v463
        %v649 = vmul.f32 %v201, %v468
        %v650 = vmul.f32 %v202, %v473
        %v651 = vmul.f32 %v203, %v478
        %v652 = vmul.f32 %v204, %v483
        %v653 = vmul.f32 %v205, %v488
        %v654 = vmul.f32 %v206, %v493
        %v655 = vmul.f32 %v207, %v498
        %v656 = vmul.f32 %v208, %v503
        %v657 = vmul.f32 %v209, %v508
        %v658 = vmul.f32 %v210, %v513
        %v659 = vmul.f32 %v211, %v518
        %v660 = vmul.f32 %v212, %v523
        %v661 = vmul.f32 %v213, %v528
        %v662 = vmul.f32 %v214, %v533
        %v663 = vmul.f32 %v215, %v538
        %v664 = vmul.f32 %v216, %v543
        %v665 = vmul.f32 %v217, %v548
        %v666 = vmul.f32 %v218, %v553
        %v667 = vmul.f32 %v219, %v558
        %v668 = vmul.f32 %v220, %v563
        %v669 = vmul.f32 %v221, %v568
        %v670 = vmul.f32 %v222, %v573
        %v671 = vmul.f32 %v223, %v578
        %v672 = vmul.f32 %v224, %v583
        %v673 = vmul.f32 %v225, %v588
        %v674 = vmul.f32 %v226, %v593
        %v675 = vmul.f32 %v227, %v598
        %v676 = vmul.f32 %v228, %v603
        %v677 = vmul.f32 %v229, %v608
        %v678 = vmul.f32 %v230, %v613
        %v679 = vpack.c.bf16 %v616, %v615
        %v680 = vpack.c.bf16 %v618, %v617
        %v681 = vpack.c.bf16 %v620, %v619
        %v682 = vpack.c.bf16 %v622, %v621
        %v683 = vpack.c.bf16 %v624, %v623
        %v684 = vpack.c.bf16 %v626, %v625
        %v685 = vpack.c.bf16 %v628, %v627
        %v686 = vpack.c.bf16 %v630, %v629
        %v687 = vpack.c.bf16 %v632, %v631
        %v688 = vpack.c.bf16 %v634, %v633
        %v689 = vpack.c.bf16 %v636, %v635
        %v690 = vpack.c.bf16 %v638, %v637
        %v691 = vpack.c.bf16 %v640, %v639
        %v692 = vpack.c.bf16 %v642, %v641
        %v693 = vpack.c.bf16 %v644, %v643
        %v694 = vpack.c.bf16 %v646, %v645
        %v695 = vpack.c.bf16 %v648, %v647
        %v696 = vpack.c.bf16 %v650, %v649
        %v697 = vpack.c.bf16 %v652, %v651
        %v698 = vpack.c.bf16 %v654, %v653
        %v699 = vpack.c.bf16 %v656, %v655
        %v700 = vpack.c.bf16 %v658, %v657
        %v701 = vpack.c.bf16 %v660, %v659
        %v702 = vpack.c.bf16 %v662, %v661
        %v703 = vpack.c.bf16 %v664, %v663
        %v704 = vpack.c.bf16 %v666, %v665
        %v705 = vpack.c.bf16 %v668, %v667
        %v706 = vpack.c.bf16 %v670, %v669
        %v707 = vpack.c.bf16 %v672, %v671
        %v708 = vpack.c.bf16 %v674, %v673
        %v709 = vpack.c.bf16 %v676, %v675
        %v710 = vpack.c.bf16 %v678, %v677
        %v743 = vunpack.c.l.b16 %v679
        %v744 = vunpack.c.h.b16 %v679
        %v745 = vunpack.c.l.b16 %v680
        %v746 = vunpack.c.h.b16 %v680
        %v747 = vunpack.c.l.b16 %v681
        %v748 = vunpack.c.h.b16 %v681
        %v749 = vunpack.c.l.b16 %v682
        %v750 = vunpack.c.h.b16 %v682
        %v751 = vunpack.c.l.b16 %v683
        %v752 = vunpack.c.h.b16 %v683
        %v753 = vunpack.c.l.b16 %v684
        %v754 = vunpack.c.h.b16 %v684
        %v755 = vunpack.c.l.b16 %v685
        %v756 = vunpack.c.h.b16 %v685
        %v757 = vunpack.c.l.b16 %v686
        %v758 = vunpack.c.h.b16 %v686
        %v759 = vunpack.c.l.b16 %v687
        %v760 = vunpack.c.h.b16 %v687
        %v761 = vunpack.c.l.b16 %v688
        %v762 = vunpack.c.h.b16 %v688
        %v763 = vunpack.c.l.b16 %v689
        %v764 = vunpack.c.h.b16 %v689
        %v765 = vunpack.c.l.b16 %v690
        %v766 = vunpack.c.h.b16 %v690
        %v767 = vunpack.c.l.b16 %v691
        %v768 = vunpack.c.h.b16 %v691
        %v769 = vunpack.c.l.b16 %v692
        %v770 = vunpack.c.h.b16 %v692
        %v771 = vunpack.c.l.b16 %v693
        %v772 = vunpack.c.h.b16 %v693
        %v773 = vunpack.c.l.b16 %v694
        %v774 = vunpack.c.h.b16 %v694
        %v775 = vunpack.c.l.b16 %v695
        %v776 = vunpack.c.h.b16 %v695
        %v777 = vunpack.c.l.b16 %v696
        %v778 = vunpack.c.h.b16 %v696
        %v779 = vunpack.c.l.b16 %v697
        %v780 = vunpack.c.h.b16 %v697
        %v781 = vunpack.c.l.b16 %v698
        %v782 = vunpack.c.h.b16 %v698
        %v783 = vunpack.c.l.b16 %v699
        %v784 = vunpack.c.h.b16 %v699
        %v785 = vunpack.c.l.b16 %v700
        %v786 = vunpack.c.h.b16 %v700
        %v787 = vunpack.c.l.b16 %v701
        %v788 = vunpack.c.h.b16 %v701
        %v789 = vunpack.c.l.b16 %v702
        %v790 = vunpack.c.h.b16 %v702
        %v791 = vunpack.c.l.b16 %v703
        %v792 = vunpack.c.h.b16 %v703
        %v793 = vunpack.c.l.b16 %v704
        %v794 = vunpack.c.h.b16 %v704
        %v795 = vunpack.c.l.b16 %v705
        %v796 = vunpack.c.h.b16 %v705
        %v797 = vunpack.c.l.b16 %v706
        %v798 = vunpack.c.h.b16 %v706
        %v799 = vunpack.c.l.b16 %v707
        %v800 = vunpack.c.h.b16 %v707
        %v801 = vunpack.c.l.b16 %v708
        %v802 = vunpack.c.h.b16 %v708
        %v803 = vunpack.c.l.b16 %v709
        %v804 = vunpack.c.h.b16 %v709
        %v805 = vunpack.c.l.b16 %v710
        %v806 = vunpack.c.h.b16 %v710
        %v807 = vpack.c.b16 %v743, %v743
        %v808 = vpack.c.b16 %v744, %v744
        %v809 = vpack.c.b16 %v745, %v745
        %v810 = vpack.c.b16 %v746, %v746
        %v811 = vpack.c.b16 %v747, %v747
        %v812 = vpack.c.b16 %v748, %v748
        %v813 = vpack.c.b16 %v749, %v749
        %v814 = vpack.c.b16 %v750, %v750
        %v815 = vpack.c.b16 %v751, %v751
        %v816 = vpack.c.b16 %v752, %v752
        %v817 = vpack.c.b16 %v753, %v753
        %v818 = vpack.c.b16 %v754, %v754
        %v819 = vpack.c.b16 %v755, %v755
        %v820 = vpack.c.b16 %v756, %v756
        %v821 = vpack.c.b16 %v757, %v757
        %v822 = vpack.c.b16 %v758, %v758
        %v823 = vpack.c.b16 %v759, %v759
        %v824 = vpack.c.b16 %v760, %v760
        %v825 = vpack.c.b16 %v761, %v761
        %v826 = vpack.c.b16 %v762, %v762
        %v827 = vpack.c.b16 %v763, %v763
        %v828 = vpack.c.b16 %v764, %v764
        %v829 = vpack.c.b16 %v765, %v765
        %v830 = vpack.c.b16 %v766, %v766
        %v831 = vpack.c.b16 %v767, %v767
        %v832 = vpack.c.b16 %v768, %v768
        %v833 = vpack.c.b16 %v769, %v769
        %v834 = vpack.c.b16 %v770, %v770
        %v835 = vpack.c.b16 %v771, %v771
        %v836 = vpack.c.b16 %v772, %v772
        %v837 = vpack.c.b16 %v773, %v773
        %v838 = vpack.c.b16 %v774, %v774
        %v839 = vpack.c.b16 %v775, %v775
        %v840 = vpack.c.b16 %v776, %v776
        %v841 = vpack.c.b16 %v777, %v777
        %v842 = vpack.c.b16 %v778, %v778
        %v843 = vpack.c.b16 %v779, %v779
        %v844 = vpack.c.b16 %v780, %v780
        %v845 = vpack.c.b16 %v781, %v781
        %v846 = vpack.c.b16 %v782, %v782
        %v847 = vpack.c.b16 %v783, %v783
        %v848 = vpack.c.b16 %v784, %v784
        %v849 = vpack.c.b16 %v785, %v785
        %v850 = vpack.c.b16 %v786, %v786
        %v851 = vpack.c.b16 %v787, %v787
        %v852 = vpack.c.b16 %v788, %v788
        %v853 = vpack.c.b16 %v789, %v789
        %v854 = vpack.c.b16 %v790, %v790
        %v855 = vpack.c.b16 %v791, %v791
        %v856 = vpack.c.b16 %v792, %v792
        %v857 = vpack.c.b16 %v793, %v793
        %v858 = vpack.c.b16 %v794, %v794
        %v859 = vpack.c.b16 %v795, %v795
        %v860 = vpack.c.b16 %v796, %v796
        %v861 = vpack.c.b16 %v797, %v797
        %v862 = vpack.c.b16 %v798, %v798
        %v863 = vpack.c.b16 %v799, %v799
        %v864 = vpack.c.b16 %v800, %v800
        %v865 = vpack.c.b16 %v801, %v801
        %v866 = vpack.c.b16 %v802, %v802
        %v867 = vpack.c.b16 %v803, %v803
        %v868 = vpack.c.b16 %v804, %v804
        %v869 = vpack.c.b16 %v805, %v805
        %v870 = vpack.c.b16 %v806, %v806
        %935 = vst [vmem:[%s153] sm:$0xf] %v807
        %936 = vst [vmem:[%s153 + $0x4] sm:$0xf] %v808
        %937 = vst [vmem:[%s153 + $0x8] sm:$0xf] %v809
        %938 = vst [vmem:[%s153 + $0xc] sm:$0xf] %v810
        %939 = vst [vmem:[%s153 + $0x10] sm:$0xf] %v811
        %940 = vst [vmem:[%s153 + $0x14] sm:$0xf] %v812
        %941 = vst [vmem:[%s153 + $0x18] sm:$0xf] %v813
        %942 = vst [vmem:[%s153 + $0x1c] sm:$0xf] %v814
        %943 = vst [vmem:[%s153 + $0x20] sm:$0xf] %v815
        %944 = vst [vmem:[%s153 + $0x24] sm:$0xf] %v816
        %945 = vst [vmem:[%s153 + $0x28] sm:$0xf] %v817
        %946 = vst [vmem:[%s153 + $0x2c] sm:$0xf] %v818
        %947 = vst [vmem:[%s153 + $0x30] sm:$0xf] %v819
        %948 = vst [vmem:[%s153 + $0x34] sm:$0xf] %v820
        %949 = vst [vmem:[%s153 + $0x38] sm:$0xf] %v821
        %950 = vst [vmem:[%s153 + $0x3c] sm:$0xf] %v822
        %951 = vst [vmem:[%s153 + $0x40] sm:$0xf] %v823
        %952 = vst [vmem:[%s153 + $0x44] sm:$0xf] %v824
        %953 = vst [vmem:[%s153 + $0x48] sm:$0xf] %v825
        %954 = vst [vmem:[%s153 + $0x4c] sm:$0xf] %v826
        %955 = vst [vmem:[%s153 + $0x50] sm:$0xf] %v827
        %956 = vst [vmem:[%s153 + $0x54] sm:$0xf] %v828
        %957 = vst [vmem:[%s153 + $0x58] sm:$0xf] %v829
        %958 = vst [vmem:[%s153 + $0x5c] sm:$0xf] %v830
        %959 = vst [vmem:[%s153 + $0x60] sm:$0xf] %v831
        %960 = vst [vmem:[%s153 + $0x64] sm:$0xf] %v832
        %961 = vst [vmem:[%s153 + $0x68] sm:$0xf] %v833
        %962 = vst [vmem:[%s153 + $0x6c] sm:$0xf] %v834
        %963 = vst [vmem:[%s153 + $0x70] sm:$0xf] %v835
        %964 = vst [vmem:[%s153 + $0x74] sm:$0xf] %v836
        %965 = vst [vmem:[%s153 + $0x78] sm:$0xf] %v837
        %966 = vst [vmem:[%s153 + $0x7c] sm:$0xf] %v838
        %967 = vst [vmem:[%s153 + $0x80] sm:$0xf] %v839
        %968 = vst [vmem:[%s153 + $0x84] sm:$0xf] %v840
        %969 = vst [vmem:[%s153 + $0x88] sm:$0xf] %v841
        %970 = vst [vmem:[%s153 + $0x8c] sm:$0xf] %v842
        %971 = vst [vmem:[%s153 + $0x90] sm:$0xf] %v843
        %972 = vst [vmem:[%s153 + $0x94] sm:$0xf] %v844
        %973 = vst [vmem:[%s153 + $0x98] sm:$0xf] %v845
        %974 = vst [vmem:[%s153 + $0x9c] sm:$0xf] %v846
        %975 = vst [vmem:[%s153 + $0xa0] sm:$0xf] %v847
        %976 = vst [vmem:[%s153 + $0xa4] sm:$0xf] %v848
        %977 = vst [vmem:[%s153 + $0xa8] sm:$0xf] %v849
        %978 = vst [vmem:[%s153 + $0xac] sm:$0xf] %v850
        %979 = vst [vmem:[%s153 + $0xb0] sm:$0xf] %v851
        %980 = vst [vmem:[%s153 + $0xb4] sm:$0xf] %v852
        %981 = vst [vmem:[%s153 + $0xb8] sm:$0xf] %v853
        %982 = vst [vmem:[%s153 + $0xbc] sm:$0xf] %v854
        %983 = vst [vmem:[%s153 + $0xc0] sm:$0xf] %v855
        %984 = vst [vmem:[%s153 + $0xc4] sm:$0xf] %v856
        %985 = vst [vmem:[%s153 + $0xc8] sm:$0xf] %v857
        %986 = vst [vmem:[%s153 + $0xcc] sm:$0xf] %v858
        %987 = vst [vmem:[%s153 + $0xd0] sm:$0xf] %v859
        %988 = vst [vmem:[%s153 + $0xd4] sm:$0xf] %v860
        %989 = vst [vmem:[%s153 + $0xd8] sm:$0xf] %v861
        %990 = vst [vmem:[%s153 + $0xdc] sm:$0xf] %v862
        %991 = vst [vmem:[%s153 + $0xe0] sm:$0xf] %v863
        %992 = vst [vmem:[%s153 + $0xe4] sm:$0xf] %v864
        %993 = vst [vmem:[%s153 + $0xe8] sm:$0xf] %v865
        %994 = vst [vmem:[%s153 + $0xec] sm:$0xf] %v866
        %995 = vst [vmem:[%s153 + $0xf0] sm:$0xf] %v867
        %996 = vst [vmem:[%s153 + $0xf4] sm:$0xf] %v868
        %997 = vst [vmem:[%s153 + $0xf8] sm:$0xf] %v869
        %998 = vst [vmem:[%s153 + $0xfc] sm:$0xf] %v870
        %s999 = sand.u32 %s76, 1
        %s1000 = scalar_lea.sflag [#allocation3], %s999
        %s1001 = sand.u32 %s76, 1
        %s1002 = smul.addr %s1001, 256
        %s1003 = scalar_lea.vmem [#allocation2], %s1002
        // Predicated region
        $region29: #{tpu_custom_call.1} parent=27 // pred_check
          %p1004 = pneg %p86
        $region30: #{tpu_custom_call.1} parent=27 // pred_check_branch
          %1006 = sbr.rel (%p1004) target = $region32
        $region31: #{tpu_custom_call.1} parent=27 // pred_region
          %s1007 = smul.u32 64, %s16
          %s1009 = ssub.s32 4096, 4096
          %1010 = vsyncadd %s1000, %s1009
          %s1011 = smul.addr %s1007, 64
          %s1012 = scalar_lea.hbm %s2, %s1011
          %s1013 = sshll.u32 %s1003, 4
          %s1014 = int_to_ptr.vmem [resolvable:$true] %s1013
          %1019 = dma.vmem_to_hbm [thread:$0]  %s1014, 4096, %s1012, %s1000, 64, 64, 4
        $region32: #{tpu_custom_call.1} parent=27 // pred_fallthru
          _
      $region28: #{tpu_custom_call.1} parent=5 // pred_fallthru
        _
      %p1020 = scmp.le.s32.totalorder 2, %s11
      // Predicated region
      $region33: #{tpu_custom_call.1} parent=5 // pred_check
        %p1021 = pneg %p1020
      $region34: #{tpu_custom_call.1} parent=5 // pred_check_branch
        %1023 = sbr.rel (%p1021) target = $region36
      $region35: #{tpu_custom_call.1} parent=5 // pred_region
        %s1024 = ssub.s32 %s11, 2
        // Predicated region
        $region37: #{tpu_custom_call.1} parent=35 // pred_check
          %p1025 = pneg %p92
        $region38: #{tpu_custom_call.1} parent=35 // pred_check_branch
          %1027 = sbr.rel (%p1025) target = $region40
        $region39: #{tpu_custom_call.1} parent=35 // pred_region
          %s1028 = sand.u32 %s77, 1
          %s1029 = scalar_lea.sflag [#allocation3], %s1028
          %s1030 = sand.u32 %s77, 1
          %s1031 = smul.addr %s1030, 256
          %s1032 = scalar_lea.vmem [#allocation2], %s1031
          %1033 = dma.done %s1029, 4096
        $region40: #{tpu_custom_call.1} parent=35 // pred_fallthru
          _
      $region36: #{tpu_custom_call.1} parent=5 // pred_fallthru
        _
    $region6: #{tpu_custom_call.1} parent=1 // loop_footer
      %s15 = sadd.s32 1, %s11
    $region7: #{tpu_custom_call.1} parent=1 // loop_footer_branch
      %10 = sbr.rel target = $region3
    $region8: #{tpu_custom_call.1} parent=1 // loop_exit
      _
    %1034 = vsyncpa [#allocation3], 1
    %s1035 = scalar_lea.sflag [#allocation3], 1
    %1036 = vsyncpa %s1035, 1

</llo_original>
